<compile_context>
chip_gen: v7x
topology: tpu7x:2x2x1
jax: 0.10.0
libtpu: 0.0.40
codegen_flags: <defaults>
</compile_context>

<pallas_src>
import functools

import numpy as np

import jax
import jax.numpy as jnp
from jax.experimental import pallas as pl
from jax.experimental.pallas import tpu as pltpu


# ---------------------------------------------------------------------------
# VMEM budgeting / tile selection
# ---------------------------------------------------------------------------

def _tile_vmem_bytes(C, W, K, pad, tile_h, splat, x_item, w_item, o_item):
    """Approximate VMEM footprint of one grid step: double-buffered blocks +
    f32 accumulator temporaries + per-tap temporaries / roll copies."""
    thp, wp = tile_h + 2 * pad, W + 2 * pad
    x_blk = C * thp * wp * x_item
    w_blk = K * K * (thp * wp if splat else tile_h * W) * w_item
    o_blk = C * tile_h * W * o_item
    acc = C * tile_h * W * 4                      # running f32 accumulator value
    bias = C * 4
    tmp = (C * thp * wp * 4 + 3 * C * tile_h * W * 4
           + (K * K * thp * wp * 4 if splat else tile_h * W * 4))
    return 2 * (x_blk + w_blk + o_blk + bias) + acc + tmp


def _choose_tile_h(H, C, W, K, pad, splat, x_item, w_item, o_item,
                   budget=32 << 20, cap=512):
    """Largest row tile that (a) divides H, (b) is a multiple of 8 (or == H) so the
    BlockSpec sublane rule holds, and (c) fits a conservative VMEM budget that
    leaves headroom on v7x's 64 MiB physical VMEM."""
    cands = sorted(
        {d for d in range(1, H + 1) if H % d == 0 and (d % 8 == 0 or d == H)},
        reverse=True)
    capped = [t for t in cands if t <= cap] or cands
    for th in capped:
        if _tile_vmem_bytes(C, W, K, pad, th, splat, x_item, w_item, o_item) <= budget:
            return th
    return capped[-1]


# ---------------------------------------------------------------------------
# One-time cached probe of pltpu.roll semantics for the lane widths we use.
# Returns "fwd" (jnp.roll convention), "rev" (opposite), or "slice" (fallback).
# ---------------------------------------------------------------------------

@functools.lru_cache(maxsize=None)
def _probe_roll_mode(wp, shift):
    try:
        x = jnp.arange(2 * 8 * wp, dtype=jnp.float32).reshape(2, 8, wp)

        def probe_kernel(x_ref, o3_ref, o2_ref):
            o3_ref[...] = pltpu.roll(x_ref[...], shift=shift, axis=2)
            o2_ref[...] = pltpu.roll(x_ref[0], shift=shift, axis=1)

        o3, o2 = pl.pallas_call(
            probe_kernel,
            out_shape=(jax.ShapeDtypeStruct((2, 8, wp), jnp.float32),
                       jax.ShapeDtypeStruct((8, wp), jnp.float32)),
        )(x)
        xn = np.asarray(jax.device_get(x))
        o3 = np.asarray(jax.device_get(o3))
        o2 = np.asarray(jax.device_get(o2))
        if (np.array_equal(o3, np.roll(xn, shift, axis=2))
                and np.array_equal(o2, np.roll(xn[0], shift, axis=1))):
            return "fwd"
        if (np.array_equal(o3, np.roll(xn, -shift, axis=2))
                and np.array_equal(o2, np.roll(xn[0], -shift, axis=1))):
            return "rev"
        return "slice"
    except Exception:
        return "slice"


# ---------------------------------------------------------------------------
# Kernel body
# ---------------------------------------------------------------------------

def _make_kernel(C, TH, W, K, level, splat, roll_mode, x_dtype, out_dtype):
    cast_x = jnp.dtype(x_dtype) != jnp.dtype(jnp.float32)

    def lane_shift(a, xs):
        # Return a[..., xs:xs+W]; use an XLU roll + aligned slice when available.
        if xs == 0:
            return a[..., :W]
        n = a.shape[-1]
        if roll_mode == "fwd":
            return pltpu.roll(a, shift=(n - xs) % n, axis=a.ndim - 1)[..., :W]
        if roll_mode == "rev":
            return pltpu.roll(a, shift=xs, axis=a.ndim - 1)[..., :W]
        return a[..., xs:xs + W]   # fallback: unaligned lane slice

    def kernel(x_ref, w_ref, b_ref, o_ref):
        # x_ref: (1, C, THp, Wp) zero-padded row window of the input
        # w_ref: gather: (1, K*K, TH, W) ; splat: (1, K*K, THp, Wp) padded window
        # b_ref: (C, 1, 1) bias; o_ref: (1, C, TH, W)
        # Hoisted cast: only materialize an f32 copy when the input is not f32.
        x_tile = x_ref[0].astype(jnp.float32) if cast_x else None

        total = None                           # f32 accumulator held in values
        for fy in range(K):
            ys = fy * level
            x_row = (x_tile[:, ys:ys + TH, :] if cast_x
                     else x_ref[0, :, ys:ys + TH, :])            # (C, TH, Wp)
            part = None
            for fx in range(K):
                xs = fx * level
                x_tap = lane_shift(x_row, xs)                    # (C, TH, W)
                if splat:
                    t = (K - 1 - fy) * K + (K - 1 - fx)
                    w_tap = lane_shift(
                        w_ref[0, t, ys:ys + TH, :].astype(jnp.float32), xs)
                else:
                    t = fy * K + fx
                    w_tap = w_ref[0, t].astype(jnp.float32)      # (TH, W)
                term = w_tap[None, :, :] * x_tap
                part = term if part is None else part + term
            total = part if total is None else total + part

        total = total + b_ref[...].astype(jnp.float32)           # (C,1,1) broadcast
        o_ref[...] = total[None].astype(out_dtype)               # single store

    return kernel


# ---------------------------------------------------------------------------
# Wrapper
# ---------------------------------------------------------------------------

def _h_windows(a, n_th, TH, THp):
    """(N, C_, Hp, Wp) -> (N*n_th, C_, THp, Wp) overlapping row windows."""
    N, C_, Hp, Wp = a.shape
    if n_th == 1:
        return a
    wins = [a[:, None, :, h * TH:h * TH + THp, :] for h in range(n_th)]
    return jnp.concatenate(wins, axis=1).reshape(N * n_th, C_, THp, Wp)


@functools.partial(
    jax.jit,
    static_argnames=("kernel_size", "splat", "level", "tile_h", "roll_mode",
                     "weights_dtype"))
def _weighted_filter_impl(x, w, bias, *, kernel_size, splat, level, tile_h,
                          roll_mode, weights_dtype):
    N, C, H, W = x.shape
    K = kernel_size
    pad = (K // 2) * level
    TH = tile_h
    THp, Wp = TH + 2 * pad, W + 2 * pad
    n_th = H // TH
    out_dtype = x.dtype

    if weights_dtype is not None:
        w = w.astype(weights_dtype)   # e.g. bf16: halves the dominant HBM stream

    # Zero padding implements "out-of-bounds taps contribute zero".
    xp = jnp.pad(x, ((0, 0), (0, 0), (pad, pad), (pad, pad)))
    x_win = _h_windows(xp, n_th, TH, THp)                 # (N*n_th, C, THp, Wp)

    if splat:
        w_pad = jnp.pad(w, ((0, 0), (0, 0), (pad, pad), (pad, pad)))
        w_in = _h_windows(w_pad, n_th, TH, THp)           # (N*n_th, K*K, THp, Wp)
        w_spec = pl.BlockSpec((1, K * K, THp, Wp),
                              lambda n, h: (n * n_th + h, 0, 0, 0))
    else:
        w_in = w                                          # (N, K*K, H, W), no halo
        w_spec = pl.BlockSpec((1, K * K, TH, W), lambda n, h: (n, 0, h, 0))

    b3 = bias.reshape(C, 1, 1)

    kernel = _make_kernel(C, TH, W, K, level, splat, roll_mode,
                          x.dtype, out_dtype)

    need = _tile_vmem_bytes(C, W, K, pad, TH, splat,
                            x.dtype.itemsize, w_in.dtype.itemsize,
                            jnp.dtype(out_dtype).itemsize)
    # Explicit scoped-VMEM limit for the computed tile budget (capped v7x-safe).
    vmem_limit = int(min(64 << 20, max(16 << 20, need + (4 << 20))))

    return pl.pallas_call(
        kernel,
        out_shape=jax.ShapeDtypeStruct((N, C, H, W), out_dtype),
        grid_spec=pltpu.PrefetchScalarGridSpec(
            num_scalar_prefetch=0,
            grid=(N, n_th),
            in_specs=[
                pl.BlockSpec((1, C, THp, Wp),
                             lambda n, h: (n * n_th + h, 0, 0, 0)),
                w_spec,
                pl.BlockSpec((C, 1, 1), lambda n, h: (0, 0, 0)),
            ],
            out_specs=pl.BlockSpec((1, C, TH, W), lambda n, h: (n, 0, h, 0)),
        ),
        compiler_params=pltpu.CompilerParams(
            dimension_semantics=("parallel", "parallel"),
            vmem_limit_bytes=vmem_limit,
        ),
    )(x_win, w_in, b3)


def weighted_filter(x, w, bias=None, *, kernel_size, splat=False, level=1,
                    weights_dtype=None, tile_h=None):
    """Pallas implementation of WeightedFilter.forward.

    x: (N, C, H, W); w: (N, K*K, H, W) per-pixel filter weights; bias: (C,) or None.
    weights_dtype: optionally downcast w (e.g. jnp.bfloat16) to cut HBM traffic.
    tile_h: optional explicit row-tile override (must divide H; multiple of 8 or H).
    """
    N, C, H, W = x.shape
    K = kernel_size
    pad = (K // 2) * level
    Wp = W + 2 * pad

    w_item = (jnp.dtype(weights_dtype).itemsize if weights_dtype is not None
              else w.dtype.itemsize)
    if (tile_h is not None and H % tile_h == 0
            and (tile_h % 8 == 0 or tile_h == H)):
        TH = tile_h
    else:
        TH = _choose_tile_h(H, C, W, K, pad, splat,
                            x.dtype.itemsize, w_item, x.dtype.itemsize)

    roll_mode = "none" if pad == 0 else _probe_roll_mode(Wp, Wp - level)
    if bias is None:
        bias = jnp.zeros((C,), x.dtype)

    return _weighted_filter_impl(
        x, w, bias, kernel_size=K, splat=splat, level=level, tile_h=TH,
        roll_mode=roll_mode, weights_dtype=weights_dtype)


# ---------------------------------------------------------------------------
# Pure-JAX reference (identical semantics) for validation
# ---------------------------------------------------------------------------

def weighted_filter_ref(x, w, bias, *, kernel_size, splat=False, level=1):
    N, C, H, W = x.shape
    K = kernel_size
    pad = (K // 2) * level
    xp = jnp.pad(x, ((0, 0), (0, 0), (pad, pad), (pad, pad)))
    wp = jnp.pad(w, ((0, 0), (0, 0), (pad, pad), (pad, pad))) if splat else w
    out = jnp.zeros((N, C, H, W), jnp.float32)
    for fy in range(K):
        for fx in range(K):
            ys, xs = fy * level, fx * level
            x_tap = xp[:, :, ys:ys + H, xs:xs + W]
            if splat:
                t = (K - 1 - fy) * K + (K - 1 - fx)
                w_tap = wp[:, t:t + 1, ys:ys + H, xs:xs + W]
            else:
                t = fy * K + fx
                w_tap = w[:, t:t + 1, :, :]
            out = out + w_tap * x_tap
    return out + bias.reshape(1, C, 1, 1)


if __name__ == "__main__":
    # Small deterministic shapes: batch=2, channels=4, spatial=16, kernel_size=3.
    N, C, H, W, K = 2, 4, 16, 16, 3
    key = jax.random.PRNGKey(0)
    kx, kw, kb = jax.random.split(key, 3)

    x = jax.random.normal(kx, (N, C, H, W), dtype=jnp.float32)
    w_logits = jax.random.normal(kw, (N, K * K, H, W), dtype=jnp.float32)
    w = jax.nn.softmax(w_logits, axis=1)         # per-pixel kernel weights
    bias = 0.1 * jnp.arange(C, dtype=jnp.float32)

    # gather mode
    out_g = jax.block_until_ready(
        weighted_filter(x, w, bias, kernel_size=K, splat=False, level=1))
    ref_g = weighted_filter_ref(x, w, bias, kernel_size=K, splat=False, level=1)
    assert out_g.shape == (N, C, H, W)
    assert jnp.allclose(out_g, ref_g, atol=1e-5, rtol=1e-5)

    # splat mode
    out_s = jax.block_until_ready(
        weighted_filter(x, w, bias, kernel_size=K, splat=True, level=1))
    ref_s = weighted_filter_ref(x, w, bias, kernel_size=K, splat=True, level=1)
    assert jnp.allclose(out_s, ref_s, atol=1e-5, rtol=1e-5)

    # spatially tiled path (forces H // tile_h = 2 tiles, exercising the halo windows)
    out_gt = jax.block_until_ready(
        weighted_filter(x, w, bias, kernel_size=K, splat=False, level=1, tile_h=8))
    assert jnp.allclose(out_gt, ref_g, atol=1e-5, rtol=1e-5)
    out_st = jax.block_until_ready(
        weighted_filter(x, w, bias, kernel_size=K, splat=True, level=1, tile_h=8))
    assert jnp.allclose(out_st, ref_s, atol=1e-5, rtol=1e-5)

    # reduced-precision weight path (halves weight HBM traffic)
    out_b = jax.block_until_ready(
        weighted_filter(x, w, bias, kernel_size=K, splat=False, level=1,
                        weights_dtype=jnp.bfloat16))
    assert jnp.allclose(out_b, ref_g, atol=5e-2, rtol=0)

    print("KERNEL_OK")
</pallas_src>

<mosaic_0001>
module attributes {stable_mosaic.version = 11 : i64} {
  func.func @probe_kernel(%arg0: memref<2x8x18xf32, #tpu.memory_space<vmem>>, %arg1: memref<2x8x18xf32, #tpu.memory_space<vmem>>, %arg2: memref<8x18xf32, #tpu.memory_space<vmem>>) attributes {dimension_semantics = [], scalar_prefetch = 0 : i64, scratch_operands = 0 : i64, tpu.core_type = #tpu.core_type<tc>} {
    %c0 = arith.constant 0 : index
    %c0_0 = arith.constant 0 : index
    %c0_1 = arith.constant 0 : index
    %0 = vector.load %arg0[%c0, %c0_0, %c0_1] : memref<2x8x18xf32, #tpu.memory_space<vmem>>, vector<2x8x18xf32>
    %c17_i32 = arith.constant 17 : i32
    %1 = tpu.dynamic_rotate %0 by %c17_i32 dim 2 : vector<2x8x18xf32>, i32 -> vector<2x8x18xf32>
    %c0_2 = arith.constant 0 : index
    %c0_3 = arith.constant 0 : index
    %c0_4 = arith.constant 0 : index
    %2 = vector.load %arg1[%c0_2, %c0_3, %c0_4] : memref<2x8x18xf32, #tpu.memory_space<vmem>>, vector<2x8x18xf32>
    tpu.vector_store %arg1[%c0_2, %c0_3, %c0_4], %1 {strides = array<i32>} : memref<2x8x18xf32, #tpu.memory_space<vmem>>, vector<2x8x18xf32>,
    %c0_5 = arith.constant 0 : index
    %c0_6 = arith.constant 0 : index
    %c0_7 = arith.constant 0 : index
    %3 = vector.load %arg0[%c0_5, %c0_6, %c0_7] : memref<2x8x18xf32, #tpu.memory_space<vmem>>, vector<1x8x18xf32>
    %4 = vector.shape_cast %3 : vector<1x8x18xf32> to vector<8x18xf32>
    %c17_i32_8 = arith.constant 17 : i32
    %5 = tpu.dynamic_rotate %4 by %c17_i32_8 dim 1 : vector<8x18xf32>, i32 -> vector<8x18xf32>
    %c0_9 = arith.constant 0 : index
    %c0_10 = arith.constant 0 : index
    %6 = vector.load %arg2[%c0_9, %c0_10] : memref<8x18xf32, #tpu.memory_space<vmem>>, vector<8x18xf32>
    tpu.vector_store %arg2[%c0_9, %c0_10], %5 {strides = array<i32>} : memref<8x18xf32, #tpu.memory_space<vmem>>, vector<8x18xf32>,
    return
  }
}

module attributes {stable_mosaic.version = 11 : i64} {
  func.func @kernel(%arg0: i32, %arg1: i32, %arg2: memref<1x4x18x18xf32, #tpu.memory_space<vmem>>, %arg3: memref<1x9x16x16xf32, #tpu.memory_space<vmem>>, %arg4: memref<4x1x1xf32, #tpu.memory_space<vmem>>, %arg5: memref<1x4x16x16xf32, #tpu.memory_space<vmem>>) attributes {dimension_semantics = [#tpu.dimension_semantics<parallel>, #tpu.dimension_semantics<parallel>], iteration_bounds = array<i64: 2, 1>, scalar_prefetch = 0 : i64, scratch_operands = 0 : i64, tpu.core_type = #tpu.core_type<tc>, window_params = [{transform_indices = @transform_0, window_bounds = array<i64: 1, 4, 18, 18>}, {transform_indices = @transform_1, window_bounds = array<i64: 1, 9, 16, 16>}, {pipeline_mode = #tpu.pipeline_mode<synchronous>, transform_indices = @transform_2, window_bounds = array<i64: 4, 1, 1>}, {transform_indices = @transform_3, window_bounds = array<i64: 1, 4, 16, 16>}]} {
    %c0 = arith.constant 0 : index
    %c0_0 = arith.constant 0 : index
    %c0_1 = arith.constant 0 : index
    %c0_2 = arith.constant 0 : index
    %0 = vector.load %arg2[%c0, %c0_0, %c0_1, %c0_2] : memref<1x4x18x18xf32, #tpu.memory_space<vmem>>, vector<1x4x16x18xf32>
    %1 = vector.shape_cast %0 : vector<1x4x16x18xf32> to vector<4x16x18xf32>
    %2 = vector.extract_strided_slice %1 {offsets = [0, 0, 0], sizes = [4, 16, 16], strides = [1, 1, 1]} : vector<4x16x18xf32> to vector<4x16x16xf32>
    %c0_3 = arith.constant 0 : index
    %c0_4 = arith.constant 0 : index
    %c0_5 = arith.constant 0 : index
    %c0_6 = arith.constant 0 : index
    %3 = vector.load %arg3[%c0_3, %c0_4, %c0_5, %c0_6] : memref<1x9x16x16xf32, #tpu.memory_space<vmem>>, vector<1x1x16x16xf32>
    %4 = vector.shape_cast %3 : vector<1x1x16x16xf32> to vector<16x16xf32>
    %5 = vector.shape_cast %4 : vector<16x16xf32> to vector<1x16x16xf32>
    %6 = vector.broadcast %5 : vector<1x16x16xf32> to vector<4x16x16xf32>
    %7 = arith.mulf %6, %2 : vector<4x16x16xf32>
    %8 = vector.extract_strided_slice %1 {offsets = [0, 0, 1], sizes = [4, 16, 16], strides = [1, 1, 1]} : vector<4x16x18xf32> to vector<4x16x16xf32>
    %c0_7 = arith.constant 0 : index
    %c1 = arith.constant 1 : index
    %c0_8 = arith.constant 0 : index
    %c0_9 = arith.constant 0 : index
    %9 = vector.load %arg3[%c0_7, %c1, %c0_8, %c0_9] : memref<1x9x16x16xf32, #tpu.memory_space<vmem>>, vector<1x1x16x16xf32>
    %10 = vector.shape_cast %9 : vector<1x1x16x16xf32> to vector<16x16xf32>
    %11 = vector.shape_cast %10 : vector<16x16xf32> to vector<1x16x16xf32>
    %12 = vector.broadcast %11 : vector<1x16x16xf32> to vector<4x16x16xf32>
    %13 = arith.mulf %12, %8 : vector<4x16x16xf32>
    %14 = arith.addf %7, %13 : vector<4x16x16xf32>
    %15 = vector.extract_strided_slice %1 {offsets = [0, 0, 2], sizes = [4, 16, 16], strides = [1, 1, 1]} : vector<4x16x18xf32> to vector<4x16x16xf32>
    %c0_10 = arith.constant 0 : index
    %c2 = arith.constant 2 : index
    %c0_11 = arith.constant 0 : index
    %c0_12 = arith.constant 0 : index
    %16 = vector.load %arg3[%c0_10, %c2, %c0_11, %c0_12] : memref<1x9x16x16xf32, #tpu.memory_space<vmem>>, vector<1x1x16x16xf32>
    %17 = vector.shape_cast %16 : vector<1x1x16x16xf32> to vector<16x16xf32>
    %18 = vector.shape_cast %17 : vector<16x16xf32> to vector<1x16x16xf32>
    %19 = vector.broadcast %18 : vector<1x16x16xf32> to vector<4x16x16xf32>
    %20 = arith.mulf %19, %15 : vector<4x16x16xf32>
    %21 = arith.addf %14, %20 : vector<4x16x16xf32>
    %c0_13 = arith.constant 0 : index
    %c0_14 = arith.constant 0 : index
    %c1_15 = arith.constant 1 : index
    %c0_16 = arith.constant 0 : index
    %22 = vector.load %arg2[%c0_13, %c0_14, %c1_15, %c0_16] : memref<1x4x18x18xf32, #tpu.memory_space<vmem>>, vector<1x4x16x18xf32>
    %23 = vector.shape_cast %22 : vector<1x4x16x18xf32> to vector<4x16x18xf32>
    %24 = vector.extract_strided_slice %23 {offsets = [0, 0, 0], sizes = [4, 16, 16], strides = [1, 1, 1]} : vector<4x16x18xf32> to vector<4x16x16xf32>
    %c0_17 = arith.constant 0 : index
    %c3 = arith.constant 3 : index
    %c0_18 = arith.constant 0 : index
    %c0_19 = arith.constant 0 : index
    %25 = vector.load %arg3[%c0_17, %c3, %c0_18, %c0_19] : memref<1x9x16x16xf32, #tpu.memory_space<vmem>>, vector<1x1x16x16xf32>
    %26 = vector.shape_cast %25 : vector<1x1x16x16xf32> to vector<16x16xf32>
    %27 = vector.shape_cast %26 : vector<16x16xf32> to vector<1x16x16xf32>
    %28 = vector.broadcast %27 : vector<1x16x16xf32> to vector<4x16x16xf32>
    %29 = arith.mulf %28, %24 : vector<4x16x16xf32>
    %30 = vector.extract_strided_slice %23 {offsets = [0, 0, 1], sizes = [4, 16, 16], strides = [1, 1, 1]} : vector<4x16x18xf32> to vector<4x16x16xf32>
    %c0_20 = arith.constant 0 : index
    %c4 = arith.constant 4 : index
    %c0_21 = arith.constant 0 : index
    %c0_22 = arith.constant 0 : index
    %31 = vector.load %arg3[%c0_20, %c4, %c0_21, %c0_22] : memref<1x9x16x16xf32, #tpu.memory_space<vmem>>, vector<1x1x16x16xf32>
    %32 = vector.shape_cast %31 : vector<1x1x16x16xf32> to vector<16x16xf32>
    %33 = vector.shape_cast %32 : vector<16x16xf32> to vector<1x16x16xf32>
    %34 = vector.broadcast %33 : vector<1x16x16xf32> to vector<4x16x16xf32>
    %35 = arith.mulf %34, %30 : vector<4x16x16xf32>
    %36 = arith.addf %29, %35 : vector<4x16x16xf32>
    %37 = vector.extract_strided_slice %23 {offsets = [0, 0, 2], sizes = [4, 16, 16], strides = [1, 1, 1]} : vector<4x16x18xf32> to vector<4x16x16xf32>
    %c0_23 = arith.constant 0 : index
    %c5 = arith.constant 5 : index
    %c0_24 = arith.constant 0 : index
    %c0_25 = arith.constant 0 : index
    %38 = vector.load %arg3[%c0_23, %c5, %c0_24, %c0_25] : memref<1x9x16x16xf32, #tpu.memory_space<vmem>>, vector<1x1x16x16xf32>
    %39 = vector.shape_cast %38 : vector<1x1x16x16xf32> to vector<16x16xf32>
    %40 = vector.shape_cast %39 : vector<16x16xf32> to vector<1x16x16xf32>
    %41 = vector.broadcast %40 : vector<1x16x16xf32> to vector<4x16x16xf32>
    %42 = arith.mulf %41, %37 : vector<4x16x16xf32>
    %43 = arith.addf %36, %42 : vector<4x16x16xf32>
    %44 = arith.addf %21, %43 : vector<4x16x16xf32>
    %c0_26 = arith.constant 0 : index
    %c0_27 = arith.constant 0 : index
    %c2_28 = arith.constant 2 : index
    %c0_29 = arith.constant 0 : index
    %45 = vector.load %arg2[%c0_26, %c0_27, %c2_28, %c0_29] : memref<1x4x18x18xf32, #tpu.memory_space<vmem>>, vector<1x4x16x18xf32>
    %46 = vector.shape_cast %45 : vector<1x4x16x18xf32> to vector<4x16x18xf32>
    %47 = vector.extract_strided_slice %46 {offsets = [0, 0, 0], sizes = [4, 16, 16], strides = [1, 1, 1]} : vector<4x16x18xf32> to vector<4x16x16xf32>
    %c0_30 = arith.constant 0 : index
    %c6 = arith.constant 6 : index
    %c0_31 = arith.constant 0 : index
    %c0_32 = arith.constant 0 : index
    %48 = vector.load %arg3[%c0_30, %c6, %c0_31, %c0_32] : memref<1x9x16x16xf32, #tpu.memory_space<vmem>>, vector<1x1x16x16xf32>
    %49 = vector.shape_cast %48 : vector<1x1x16x16xf32> to vector<16x16xf32>
    %50 = vector.shape_cast %49 : vector<16x16xf32> to vector<1x16x16xf32>
    %51 = vector.broadcast %50 : vector<1x16x16xf32> to vector<4x16x16xf32>
    %52 = arith.mulf %51, %47 : vector<4x16x16xf32>
    %53 = vector.extract_strided_slice %46 {offsets = [0, 0, 1], sizes = [4, 16, 16], strides = [1, 1, 1]} : vector<4x16x18xf32> to vector<4x16x16xf32>
    %c0_33 = arith.constant 0 : index
    %c7 = arith.constant 7 : index
    %c0_34 = arith.constant 0 : index
    %c0_35 = arith.constant 0 : index
    %54 = vector.load %arg3[%c0_33, %c7, %c0_34, %c0_35] : memref<1x9x16x16xf32, #tpu.memory_space<vmem>>, vector<1x1x16x16xf32>
    %55 = vector.shape_cast %54 : vector<1x1x16x16xf32> to vector<16x16xf32>
    %56 = vector.shape_cast %55 : vector<16x16xf32> to vector<1x16x16xf32>
    %57 = vector.broadcast %56 : vector<1x16x16xf32> to vector<4x16x16xf32>
    %58 = arith.mulf %57, %53 : vector<4x16x16xf32>
    %59 = arith.addf %52, %58 : vector<4x16x16xf32>
    %60 = vector.extract_strided_slice %46 {offsets = [0, 0, 2], sizes = [4, 16, 16], strides = [1, 1, 1]} : vector<4x16x18xf32> to vector<4x16x16xf32>
    %c0_36 = arith.constant 0 : index
    %c8 = arith.constant 8 : index
    %c0_37 = arith.constant 0 : index
    %c0_38 = arith.constant 0 : index
    %61 = vector.load %arg3[%c0_36, %c8, %c0_37, %c0_38] : memref<1x9x16x16xf32, #tpu.memory_space<vmem>>, vector<1x1x16x16xf32>
    %62 = vector.shape_cast %61 : vector<1x1x16x16xf32> to vector<16x16xf32>
    %63 = vector.shape_cast %62 : vector<16x16xf32> to vector<1x16x16xf32>
    %64 = vector.broadcast %63 : vector<1x16x16xf32> to vector<4x16x16xf32>
    %65 = arith.mulf %64, %60 : vector<4x16x16xf32>
    %66 = arith.addf %59, %65 : vector<4x16x16xf32>
    %67 = arith.addf %44, %66 : vector<4x16x16xf32>
    %c0_39 = arith.constant 0 : index
    %c0_40 = arith.constant 0 : index
    %c0_41 = arith.constant 0 : index
    %68 = vector.load %arg4[%c0_39, %c0_40, %c0_41] : memref<4x1x1xf32, #tpu.memory_space<vmem>>, vector<4x1x1xf32>
    %69 = vector.broadcast %68 : vector<4x1x1xf32> to vector<4x16x16xf32>
    %70 = arith.addf %67, %69 : vector<4x16x16xf32>
    %71 = vector.shape_cast %70 : vector<4x16x16xf32> to vector<1x4x16x16xf32>
    %c0_42 = arith.constant 0 : index
    %c0_43 = arith.constant 0 : index
    %c0_44 = arith.constant 0 : index
    %c0_45 = arith.constant 0 : index
    %72 = vector.load %arg5[%c0_42, %c0_43, %c0_44, %c0_45] : memref<1x4x16x16xf32, #tpu.memory_space<vmem>>, vector<1x4x16x16xf32>
    tpu.vector_store %arg5[%c0_42, %c0_43, %c0_44, %c0_45], %71 {strides = array<i32>} : memref<1x4x16x16xf32, #tpu.memory_space<vmem>>, vector<1x4x16x16xf32>,
    return
  }
  func.func @transform_0(%arg0: i32, %arg1: i32) -> (i32, i32, i32, i32) {
    %c1_i32 = arith.constant 1 : i32
    %0 = arith.muli %arg0, %c1_i32 : i32
    %1 = arith.addi %0, %arg1 : i32
    %c0_i32 = arith.constant 0 : i32
    %c0_i32_0 = arith.constant 0 : i32
    %c0_i32_1 = arith.constant 0 : i32
    %c0_i32_2 = arith.constant 0 : i32
    return %1, %c0_i32, %c0_i32_0, %c0_i32_1 : i32, i32, i32, i32
  }
  func.func @transform_1(%arg0: i32, %arg1: i32) -> (i32, i32, i32, i32) {
    %c0_i32 = arith.constant 0 : i32
    %c0_i32_0 = arith.constant 0 : i32
    %c0_i32_1 = arith.constant 0 : i32
    return %arg0, %c0_i32, %arg1, %c0_i32_0 : i32, i32, i32, i32
  }
  func.func @transform_2(%arg0: i32, %arg1: i32) -> (i32, i32, i32) {
    %c0_i32 = arith.constant 0 : i32
    %c0_i32_0 = arith.constant 0 : i32
    %c0_i32_1 = arith.constant 0 : i32
    %c0_i32_2 = arith.constant 0 : i32
    return %c0_i32, %c0_i32_0, %c0_i32_1 : i32, i32, i32
  }
  func.func @transform_3(%arg0: i32, %arg1: i32) -> (i32, i32, i32, i32) {
    %c0_i32 = arith.constant 0 : i32
    %c0_i32_0 = arith.constant 0 : i32
    %c0_i32_1 = arith.constant 0 : i32
    return %arg0, %c0_i32, %arg1, %c0_i32_0 : i32, i32, i32, i32
  }
}

</mosaic_0001>

<llo_original>
// kernel: tpu_custom_call.1
$region0: #{tpu_custom_call.1}
  #allocation0 [shape = 'u32[]', space=smem, size = 0x4, offset = 0x4, fixed_abs, tag = 'smem constant byte address 0x4 - core index']
  #allocation1 [shape = 'u32[144,128]{1,0:T(1,128)}', space=vmem, size = 0x12000, scoped, tag = 'internal scratch']
  %s0 = inlined_call_operand.hbm [shape: f32[2,8,18], index: 0, kind: input, shape index: {}]
  %s1 = inlined_call_operand.hbm [shape: f32[2,8,18], index: 1, kind: output, shape index: {0}]
  %s2 = inlined_call_operand.hbm [shape: f32[8,18], index: 2, kind: output, shape index: {1}]
  %3 = xla_tuple %s1, %s2
  %s4 = sld [smem:[#allocation0]]
  $region26: #{tpu_custom_call.1} parent=0
    _
  %s6 = ssub.s32 1, %s4
  %s7 = scalar_select 0, %s6, %s4
  $region1: #{tpu_custom_call.1} parent=0
    #allocation2 [shape = 'u8[8192]{0}', space=vmem, size = 0x2000, scoped, tag = 'input window, operand 0, single buffered']
    #allocation3 [shape = 's32[1]{0}', space=sflag, size = 0x4, scoped, tag = 'scoped memory for tpu_custom_call.1']
    #allocation4 [shape = 's32[1]{0}', space=sflag, size = 0x4, scoped, tag = 'scoped memory for tpu_custom_call.1']
    #allocation5 [shape = 'u8[8192]{0}', space=vmem, size = 0x2000, scoped, tag = 'output window, operand 0, single buffered']
    #allocation6 [shape = 'u8[4096]{0}', space=vmem, size = 0x1000, scoped, tag = 'output window, operand 1, single buffered']
    #allocation7 [shape = 's32[1]{0}', space=sflag, size = 0x4, scoped, tag = 'scoped memory for tpu_custom_call.1']
    %8 = vsyncpa [#allocation3], 0
    %9 = vsyncpa [#allocation4], 0
    %10 = vsyncpa [#allocation7], 0
    // Predicated region
    $region2: #{tpu_custom_call.1} parent=1 // pred_check
      _
    $region3: #{tpu_custom_call.1} parent=1 // pred_check_branch
      %12 = sbr.rel (0) target = $region5
    $region4: #{tpu_custom_call.1} parent=1 // pred_region
      %s14 = ssub.s32 256, 256
      %15 = vsyncadd [#allocation3], %s14
      %s16 = sshll.u32 [#allocation2], 4
      %s17 = int_to_ptr.vmem [resolvable:$true] %s16
      %22 = dma.hbm_to_vmem [thread:$0]  %s0, 256, %s17, [#allocation3], 128, 128, 8
    $region5: #{tpu_custom_call.1} parent=1 // pred_fallthru
      _
    // Predicated region
    $region6: #{tpu_custom_call.1} parent=1 // pred_check
      _
    $region7: #{tpu_custom_call.1} parent=1 // pred_check_branch
      %24 = sbr.rel (0) target = $region9
    $region8: #{tpu_custom_call.1} parent=1 // pred_region
      %25 = dma.done [#allocation3], 256
    $region9: #{tpu_custom_call.1} parent=1 // pred_fallthru
      _
    %v26 = vld [vmem:[#allocation2] sm:$0xff]
    %v27 = vld [vmem:[#allocation2 + $0x8] sm:$0xff]
    %vm28 = vcmask 1047696
    %29 = vrot.lane.b32.xlu0 %v26, 18
    %v30 = vpop.permute.xlu0 %29
    %v31 = vsel %vm28, %v30, %v26
    %32 = vrot.lane.b32.xlu0 %v27, 18
    %v33 = vpop.permute.xlu0 %32
    %v34 = vsel %vm28, %v33, %v27
    %35 = vrot.lane.b32.xlu0 %v31, 18
    %v36 = vpop.permute.xlu0 %35
    %37 = vrot.lane.b32.xlu0 %v34, 18
    %v38 = vpop.permute.xlu0 %37
    %v39 = vsel %vm28, %v36, %v26
    %v40 = vsel %vm28, %v38, %v27
    %43 = vrot.lane.b32.xlu0 %v39, 127
    %v44 = vpop.permute.xlu0 %43
    %45 = vrot.lane.b32.xlu0 %v40, 127
    %v46 = vpop.permute.xlu0 %45
    %vm49 = vcmask 146432
    %50 = vst.msk [vmem:[#allocation5] sm:$0xff] %vm49, %v44
    %51 = vst.msk [vmem:[#allocation5 + $0x8] sm:$0xff] %vm49, %v46
    %v52 = vld [vmem:[#allocation2] sm:$0xff]
    %53 = vrot.lane.b32.xlu0 %v52, 18
    %v54 = vpop.permute.xlu0 %53
    %v55 = vsel %vm28, %v54, %v52
    %56 = vrot.lane.b32.xlu0 %v55, 18
    %v57 = vpop.permute.xlu0 %56
    %v58 = vsel %vm28, %v57, %v52
    %60 = vrot.lane.b32.xlu0 %v58, 127
    %v61 = vpop.permute.xlu0 %60
    %63 = vst.msk [vmem:[#allocation6] sm:$0xff] %vm49, %v61
    // Predicated region
    $region10: #{tpu_custom_call.1} parent=1 // pred_check
      _
    $region11: #{tpu_custom_call.1} parent=1 // pred_check_branch
      %65 = sbr.rel (0) target = $region13
    $region12: #{tpu_custom_call.1} parent=1 // pred_region
      %s67 = ssub.s32 256, 256
      %68 = vsyncadd [#allocation4], %s67
      %s69 = sshll.u32 [#allocation5], 4
      %s70 = int_to_ptr.vmem [resolvable:$true] %s69
      %75 = dma.vmem_to_hbm [thread:$0]  %s70, 256, %s1, [#allocation4], 128, 128, 8
    $region13: #{tpu_custom_call.1} parent=1 // pred_fallthru
      _
    // Predicated region
    $region14: #{tpu_custom_call.1} parent=1 // pred_check
      _
    $region15: #{tpu_custom_call.1} parent=1 // pred_check_branch
      %77 = sbr.rel (0) target = $region17
    $region16: #{tpu_custom_call.1} parent=1 // pred_region
      %s79 = ssub.s32 128, 128
      %80 = vsyncadd [#allocation7], %s79
      %s82 = sshll.u32 [#allocation6], 4
      %s83 = int_to_ptr.vmem [resolvable:$true] %s82
      %85 = dma.vmem_to_hbm [thread:$0]  %s83, 128, %s2, [#allocation7]
    $region17: #{tpu_custom_call.1} parent=1 // pred_fallthru
      _
    // Predicated region
    $region18: #{tpu_custom_call.1} parent=1 // pred_check
      _
    $region19: #{tpu_custom_call.1} parent=1 // pred_check_branch
      %87 = sbr.rel (0) target = $region21
    $region20: #{tpu_custom_call.1} parent=1 // pred_region
      %88 = dma.done [#allocation4], 256
    $region21: #{tpu_custom_call.1} parent=1 // pred_fallthru
      _
    // Predicated region
    $region22: #{tpu_custom_call.1} parent=1 // pred_check
      _
    $region23: #{tpu_custom_call.1} parent=1 // pred_check_branch
      %90 = sbr.rel (0) target = $region25
    $region24: #{tpu_custom_call.1} parent=1 // pred_region
      %91 = dma.done [#allocation7], 128
    $region25: #{tpu_custom_call.1} parent=1 // pred_fallthru
      _
    %92 = vsyncpa [#allocation3], 1
    %93 = vsyncpa [#allocation4], 1
    %94 = vsyncpa [#allocation7], 1

// kernel: _weighted_filter_impl.1
$region0: #{_weighted_filter_impl.1}
  #allocation0 [shape = 'u32[]', space=smem, size = 0x4, offset = 0x4, fixed_abs, tag = 'smem constant byte address 0x4 - core index']
  #allocation1 [shape = 'u32[144,128]{1,0:T(1,128)}', space=vmem, size = 0x12000, scoped, tag = 'internal scratch']
  %s0 = inlined_call_operand.vmem [shape: f32[2,4,18,18], index: 0, kind: input, shape index: {}]
  %s1 = inlined_call_operand.vmem [shape: f32[2,9,16,16], index: 1, kind: input, shape index: {}]
  %s2 = inlined_call_operand.vmem [shape: f32[4,1,1], index: 2, kind: input, shape index: {}]
  %s3 = inlined_call_operand.hbm [shape: f32[2,4,16,16], index: 3, kind: output, shape index: {}]
  %s4 = sld [smem:[#allocation0]]
  $region45: #{_weighted_filter_impl.1} parent=0
    _
  %s6 = ssub.s32 1, %s4
  %s7 = scalar_select 0, %s6, %s4
  $region1: #{_weighted_filter_impl.1} parent=0
    #allocation2 [shape = 'u8[65536]{0}', space=vmem, size = 0x10000, scoped, tag = 'output window, operand 0']
    #allocation3 [shape = 's32[2]{0}', space=sflag, size = 0x8, scoped, tag = 'scoped memory for _weighted_filter_impl.1']
    %8 = vsyncpa [#allocation3], 0
    %s9 = scalar_lea.sflag [#allocation3], 1
    %10 = vsyncpa %s9, 0
    loop: start=0, step=1, limit=4
    $region2: #{_weighted_filter_impl.1} parent=1 // loop_pre_header
      _
    $region3: #{_weighted_filter_impl.1} parent=1 // loop_header
      %s12 = sphi 0, %s16
      %p13 = scmp.ge.s32.totalorder %s12, 4
      %s19 = sphi 0, %s31
      %s20 = sphi 0, %s27
      %s21 = sphi 0, %s19
      %s22 = sphi 0, %s20
      %s23 = sphi 0, %s21
      %s24 = sphi 0, %s22
      %s36 = sphi 0, %s38
      %s39 = sphi 0, %s36
      %s40 = sphi 0, %s39
      %s56 = sphi 0, %s40
      %s64 = sphi 0, %s66
      %s67 = sphi 0, %s64
      %s68 = sphi 0, %s67
      %s84 = sphi 0, %s68
      %s88 = sphi 0, %s88
      %s90 = sphi 0, %s88
      %s91 = sphi 0, %s90
      %s105 = sphi 0, %s91
      %s113 = sphi 0, %s115
      %s116 = sphi 0, %s113
      %s117 = sphi 0, %s116
      %s133 = sphi 0, %s117
    $region4: #{_weighted_filter_impl.1} parent=1 // loop_header_branch
      %15 = sbr.rel (%p13) target = $region8
    $region5: #{_weighted_filter_impl.1} parent=1 // loop_body
      %s17 = ssub.s32 %s12, 1
      %s18 = ssub.s32 %s12, 2
      %s25 = sadd.s32 1, %s20
      %p26 = scmp.ge.s32.totalorder %s25, 1
      %s27 = scalar_select %p26, 0, %s25
      %s28 = sadd.s32 1, %s19
      %s29 = scalar_select %p26, %s28, %s19
      %p30 = scmp.ge.s32.totalorder %s29, 2
      %s31 = scalar_select %p30, 0, %s29
      %s32 = sadd.s32 %s19, %s20
      %s33 = sadd.s32 %s31, %s27
      %s34 = ssub.s32 %s32, %s33
      %p35 = scmp.eq.s32.totalorder %s34, 0
      %s37 = sadd.s32 %s36, 1
      %s38 = scalar_select %p35, %s36, %s37
      %p41 = pneg %p35
      %p42 = scmp.eq.s32.totalorder %s12, 1
      %p43 = por %p41, %p42
      %p44 = scmp.ne.s32.totalorder %s36, %s39
      %p45 = scmp.eq.s32.totalorder %s12, 0
      %p46 = por %p44, %p45
      %p47 = scmp.ne.s32.totalorder %s36, %s39
      %p48 = scmp.eq.s32.totalorder %s17, 1
      %p49 = por %p47, %p48
      %p50 = scmp.ne.s32.totalorder %s39, %s40
      %p51 = scmp.eq.s32.totalorder %s17, 0
      %p52 = por %p50, %p51
      %p53 = scmp.ne.s32.totalorder %s39, %s40
      %p54 = scmp.eq.s32.totalorder %s18, 1
      %p55 = por %p53, %p54
      %p57 = scmp.ne.s32.totalorder %s40, %s56
      %p58 = scmp.eq.s32.totalorder %s18, 0
      %p59 = por %p57, %p58
      %s60 = ssub.s32 %s19, %s31
      %s61 = ssub.s32 %s20, %s27
      %s62 = sor.u32 %s60, %s61
      %p63 = scmp.eq.s32.totalorder %s62, 0
      %s65 = sadd.s32 %s64, 1
      %s66 = scalar_select %p63, %s64, %s65
      %p69 = pneg %p63
      %p70 = scmp.eq.s32.totalorder %s12, 1
      %p71 = por %p69, %p70
      %p72 = scmp.ne.s32.totalorder %s64, %s67
      %p73 = scmp.eq.s32.totalorder %s12, 0
      %p74 = por %p72, %p73
      %p75 = scmp.ne.s32.totalorder %s64, %s67
      %p76 = scmp.eq.s32.totalorder %s17, 1
      %p77 = por %p75, %p76
      %p78 = scmp.ne.s32.totalorder %s67, %s68
      %p79 = scmp.eq.s32.totalorder %s17, 0
      %p80 = por %p78, %p79
      %p81 = scmp.ne.s32.totalorder %s67, %s68
      %p82 = scmp.eq.s32.totalorder %s18, 1
      %p83 = por %p81, %p82
      %p85 = scmp.ne.s32.totalorder %s68, %s84
      %p86 = scmp.eq.s32.totalorder %s18, 0
      %p87 = por %p85, %p86
      %s89 = sadd.s32 %s88, 1
      %p92 = scmp.eq.s32.totalorder %s12, 1
      %p93 = scmp.ne.s32.totalorder %s88, %s90
      %p94 = scmp.eq.s32.totalorder %s12, 0
      %p95 = por %p93, %p94
      %p96 = scmp.ne.s32.totalorder %s88, %s90
      %p97 = scmp.eq.s32.totalorder %s17, 1
      %p98 = por %p96, %p97
      %p99 = scmp.ne.s32.totalorder %s90, %s91
      %p100 = scmp.eq.s32.totalorder %s17, 0
      %p101 = por %p99, %p100
      %p102 = scmp.ne.s32.totalorder %s90, %s91
      %p103 = scmp.eq.s32.totalorder %s18, 1
      %p104 = por %p102, %p103
      %p106 = scmp.ne.s32.totalorder %s91, %s105
      %p107 = scmp.eq.s32.totalorder %s18, 0
      %p108 = por %p106, %p107
      %s109 = ssub.s32 %s19, %s31
      %s110 = ssub.s32 %s20, %s27
      %s111 = sor.u32 %s109, %s110
      %p112 = scmp.eq.s32.totalorder %s111, 0
      %s114 = sadd.s32 %s113, 1
      %s115 = scalar_select %p112, %s113, %s114
      %p118 = pneg %p112
      %p119 = scmp.eq.s32.totalorder %s12, 1
      %p120 = por %p118, %p119
      %p121 = scmp.ne.s32.totalorder %s113, %s116
      %p122 = scmp.eq.s32.totalorder %s12, 0
      %p123 = por %p121, %p122
      %p124 = scmp.ne.s32.totalorder %s113, %s116
      %p125 = scmp.eq.s32.totalorder %s17, 1
      %p126 = por %p124, %p125
      %p127 = scmp.ne.s32.totalorder %s116, %s117
      %p128 = scmp.eq.s32.totalorder %s17, 0
      %p129 = por %p127, %p128
      %p130 = scmp.ne.s32.totalorder %s116, %s117
      %p131 = scmp.eq.s32.totalorder %s18, 1
      %p132 = por %p130, %p131
      %p134 = scmp.ne.s32.totalorder %s117, %s133
      %p135 = scmp.eq.s32.totalorder %s18, 0
      %p136 = por %p134, %p135
      %p137 = scmp.le.s32.totalorder 1, %s12
      %p138 = scmp.lt.s32.totalorder %s12, 3
      %p139 = pnand %p137, %p138
      %p140 = pneg %p139
      // Predicated region
      $region9: #{_weighted_filter_impl.1} parent=5 // pred_check
        _
      $region10: #{_weighted_filter_impl.1} parent=5 // pred_check_branch
        %142 = sbr.rel (%p139) target = $region12
      $region11: #{_weighted_filter_impl.1} parent=5 // pred_region
        %s143 = ssub.s32 %s12, 1
        // Predicated region
        $region13: #{_weighted_filter_impl.1} parent=11 // pred_check
          %p144 = pneg %p101
        $region14: #{_weighted_filter_impl.1} parent=11 // pred_check_branch
          %146 = sbr.rel (%p144) target = $region16
        $region15: #{_weighted_filter_impl.1} parent=11 // pred_region
          _
        $region16: #{_weighted_filter_impl.1} parent=11 // pred_fallthru
          _
      $region12: #{_weighted_filter_impl.1} parent=5 // pred_fallthru
        _
      %p147 = scmp.lt.s32.totalorder %s12, 2
      // Predicated region
      $region17: #{_weighted_filter_impl.1} parent=5 // pred_check
        %p148 = pneg %p147
      $region18: #{_weighted_filter_impl.1} parent=5 // pred_check_branch
        %150 = sbr.rel (%p148) target = $region20
      $region19: #{_weighted_filter_impl.1} parent=5 // pred_region
        // Predicated region
        $region21: #{_weighted_filter_impl.1} parent=19 // pred_check
          %p151 = pneg %p46
        $region22: #{_weighted_filter_impl.1} parent=19 // pred_check_branch
          %153 = sbr.rel (%p151) target = $region24
        $region23: #{_weighted_filter_impl.1} parent=19 // pred_region
          %s154 = sadd.s32 %s19, %s20
          %p155 = scmp.lt.s32.totalorder %s154, 1
          %s156 = scalar_select %p155, %s154, 1
          %s157 = smul.addr %s156, 12
          %s158 = smul.addr %s157, 8
          %s159 = scalar_lea.vmem %s0, %s158
          %s160 = sadd.s32 %s19, %s20
        $region24: #{_weighted_filter_impl.1} parent=19 // pred_fallthru
          _
        // Predicated region
        $region25: #{_weighted_filter_impl.1} parent=19 // pred_check
          %p161 = pneg %p74
        $region26: #{_weighted_filter_impl.1} parent=19 // pred_check_branch
          %163 = sbr.rel (%p161) target = $region28
        $region27: #{_weighted_filter_impl.1} parent=19 // pred_region
          %s164 = smul.u32 2, %s20
          %p165 = scmp.lt.s32.totalorder %s19, 1
          %s166 = scalar_select %p165, %s19, 1
          %p167 = scmp.lt.s32.totalorder %s164, 1
          %s168 = scalar_select %p167, %s164, 1
          %s169 = smul.addr %s166, 18
          %s170 = sadd.s32 %s168, %s169
          %s171 = smul.addr %s170, 8
          %s172 = scalar_lea.vmem %s1, %s171
          %s173 = smul.u32 2, %s20
        $region28: #{_weighted_filter_impl.1} parent=19 // pred_fallthru
          _
      $region20: #{_weighted_filter_impl.1} parent=5 // pred_fallthru
        _
      %p174 = scmp.le.s32.totalorder 1, %s12
      %p175 = scmp.lt.s32.totalorder %s12, 3
      %p176 = pnand %p174, %p175
      %p177 = pneg %p176
      // Predicated region
      $region29: #{_weighted_filter_impl.1} parent=5 // pred_check
        _
      $region30: #{_weighted_filter_impl.1} parent=5 // pred_check_branch
        %179 = sbr.rel (%p176) target = $region32
      $region31: #{_weighted_filter_impl.1} parent=5 // pred_region
        %s180 = ssub.s32 %s12, 1
        %s181 = sadd.s32 %s21, %s22
        %p182 = scmp.lt.s32.totalorder %s181, 1
        %s183 = scalar_select %p182, %s181, 1
        %s184 = smul.addr %s183, 12
        %s185 = smul.addr %s184, 8
        %s186 = scalar_lea.vmem %s0, %s185
        %p187 = pneg %p52
        %p188 = pneg %p49
        %s189 = smul.u32 2, %s22
        %p190 = scmp.lt.s32.totalorder %s21, 1
        %s191 = scalar_select %p190, %s21, 1
        %p192 = scmp.lt.s32.totalorder %s189, 1
        %s193 = scalar_select %p192, %s189, 1
        %s194 = smul.addr %s191, 18
        %s195 = sadd.s32 %s193, %s194
        %s196 = smul.addr %s195, 8
        %s197 = scalar_lea.vmem %s1, %s196
        %p198 = pneg %p80
        %p199 = pneg %p77
        %p200 = pneg %p101
        %p201 = pneg %p98
        %p202 = pneg %p129
        %p203 = pneg %p126
        %s204 = sand.u32 %s116, 1
        %s205 = scalar_lea.sflag [#allocation3], %s204
        %s206 = sand.u32 %s116, 1
        %s207 = smul.addr %s206, 64
        %s208 = scalar_lea.vmem [#allocation2], %s207
        %s209 = sadd.s32 %s21, %s22
        %p210 = scmp.lt.s32.totalorder %s209, 1
        %s211 = scalar_select %p210, %s209, 1
        %s212 = smul.addr %s211, 12
        %s213 = smul.addr %s212, 8
        %s214 = scalar_lea.vmem %s0, %s213
        %s215 = sadd.s32 %s21, %s22
        %s216 = smul.u32 2, %s22
        %p217 = scmp.lt.s32.totalorder %s21, 1
        %s218 = scalar_select %p217, %s21, 1
        %p219 = scmp.lt.s32.totalorder %s216, 1
        %s220 = scalar_select %p219, %s216, 1
        %s221 = smul.addr %s218, 18
        %s222 = sadd.s32 %s220, %s221
        %s223 = smul.addr %s222, 8
        %s224 = scalar_lea.vmem %s1, %s223
        %s225 = smul.u32 2, %s22
        %s226 = smul.u32 2, %s22
        %v227 = vld [vmem:[%s214] sm:$0xff]
        %v228 = vld [vmem:[%s214 + $0x8] sm:$0xff]
        %v229 = vld [vmem:[%s214 + $0x18] sm:$0xff]
        %v230 = vld [vmem:[%s214 + $0x20] sm:$0xff]
        %v231 = vld [vmem:[%s214 + $0x30] sm:$0xff]
        %v232 = vld [vmem:[%s214 + $0x38] sm:$0xff]
        %v233 = vld [vmem:[%s214 + $0x48] sm:$0xff]
        %v234 = vld [vmem:[%s214 + $0x50] sm:$0xff]
        %v235 = vld [vmem:[%s224] sm:$0xff]
        %v236 = vld [vmem:[%s224 + $0x8] sm:$0xff]
        %v237 = vmul.f32 %v235, %v227
        %v238 = vmul.f32 %v236, %v228
        %v239 = vmul.f32 %v235, %v229
        %v240 = vmul.f32 %v236, %v230
        %v241 = vmul.f32 %v235, %v231
        %v242 = vmul.f32 %v236, %v232
        %v243 = vmul.f32 %v235, %v233
        %v244 = vmul.f32 %v236, %v234
        %s245 = scalar_lea.vmem %s224, 16
        %v246 = vld [vmem:[%s245] sm:$0xff]
        %v247 = vld [vmem:[%s245 + $0x8] sm:$0xff]
        %256 = vrot.lane.b32.xlu0 %v227, 127
        %v257 = vpop.permute.xlu0 %256
        %258 = vrot.lane.b32.xlu0 %v228, 127
        %v259 = vpop.permute.xlu0 %258
        %260 = vrot.lane.b32.xlu0 %v229, 127
        %v261 = vpop.permute.xlu0 %260
        %262 = vrot.lane.b32.xlu0 %v230, 127
        %v263 = vpop.permute.xlu0 %262
        %264 = vrot.lane.b32.xlu0 %v231, 127
        %v265 = vpop.permute.xlu0 %264
        %266 = vrot.lane.b32.xlu0 %v232, 127
        %v267 = vpop.permute.xlu0 %266
        %268 = vrot.lane.b32.xlu0 %v233, 127
        %v269 = vpop.permute.xlu0 %268
        %270 = vrot.lane.b32.xlu0 %v234, 127
        %v271 = vpop.permute.xlu0 %270
        %v280 = vmul.f32 %v246, %v257
        %v281 = vmul.f32 %v247, %v259
        %v282 = vmul.f32 %v246, %v261
        %v283 = vmul.f32 %v247, %v263
        %v284 = vmul.f32 %v246, %v265
        %v285 = vmul.f32 %v247, %v267
        %v286 = vmul.f32 %v246, %v269
        %v287 = vmul.f32 %v247, %v271
        %v288 = vadd.f32 %v237, %v280
        %v289 = vadd.f32 %v238, %v281
        %v290 = vadd.f32 %v239, %v282
        %v291 = vadd.f32 %v240, %v283
        %v292 = vadd.f32 %v241, %v284
        %v293 = vadd.f32 %v242, %v285
        %v294 = vadd.f32 %v243, %v286
        %v295 = vadd.f32 %v244, %v287
        %s296 = scalar_lea.vmem %s224, 32
        %v297 = vld [vmem:[%s296] sm:$0xff]
        %v298 = vld [vmem:[%s296 + $0x8] sm:$0xff]
        %299 = vrot.lane.b32.xlu0 %v227, 126
        %v300 = vpop.permute.xlu0 %299
        %301 = vrot.lane.b32.xlu0 %v228, 126
        %v302 = vpop.permute.xlu0 %301
        %303 = vrot.lane.b32.xlu0 %v229, 126
        %v304 = vpop.permute.xlu0 %303
        %305 = vrot.lane.b32.xlu0 %v230, 126
        %v306 = vpop.permute.xlu0 %305
        %307 = vrot.lane.b32.xlu0 %v231, 126
        %v308 = vpop.permute.xlu0 %307
        %309 = vrot.lane.b32.xlu0 %v232, 126
        %v310 = vpop.permute.xlu0 %309
        %311 = vrot.lane.b32.xlu0 %v233, 126
        %v312 = vpop.permute.xlu0 %311
        %313 = vrot.lane.b32.xlu0 %v234, 126
        %v314 = vpop.permute.xlu0 %313
        %v323 = vmul.f32 %v297, %v300
        %v324 = vmul.f32 %v298, %v302
        %v325 = vmul.f32 %v297, %v304
        %v326 = vmul.f32 %v298, %v306
        %v327 = vmul.f32 %v297, %v308
        %v328 = vmul.f32 %v298, %v310
        %v329 = vmul.f32 %v297, %v312
        %v330 = vmul.f32 %v298, %v314
        %v331 = vadd.f32 %v288, %v323
        %v332 = vadd.f32 %v289, %v324
        %v333 = vadd.f32 %v290, %v325
        %v334 = vadd.f32 %v291, %v326
        %v335 = vadd.f32 %v292, %v327
        %v336 = vadd.f32 %v293, %v328
        %v337 = vadd.f32 %v294, %v329
        %v338 = vadd.f32 %v295, %v330
        %v339 = vld [vmem:[%s214 + $0x1] sm:$0xff]
        %v340 = vld [vmem:[%s214 + $0x9] sm:$0xff]
        %v341 = vld [vmem:[%s214 + $0x19] sm:$0xff]
        %v342 = vld [vmem:[%s214 + $0x21] sm:$0xff]
        %v343 = vld [vmem:[%s214 + $0x31] sm:$0xff]
        %v344 = vld [vmem:[%s214 + $0x39] sm:$0xff]
        %v345 = vld [vmem:[%s214 + $0x49] sm:$0xff]
        %v346 = vld [vmem:[%s214 + $0x51] sm:$0xff]
        %s347 = scalar_lea.vmem %s224, 48
        %v348 = vld [vmem:[%s347] sm:$0xff]
        %v349 = vld [vmem:[%s347 + $0x8] sm:$0xff]
        %v350 = vmul.f32 %v348, %v339
        %v351 = vmul.f32 %v349, %v340
        %v352 = vmul.f32 %v348, %v341
        %v353 = vmul.f32 %v349, %v342
        %v354 = vmul.f32 %v348, %v343
        %v355 = vmul.f32 %v349, %v344
        %v356 = vmul.f32 %v348, %v345
        %v357 = vmul.f32 %v349, %v346
        %s358 = scalar_lea.vmem %s224, 64
        %v359 = vld [vmem:[%s358] sm:$0xff]
        %v360 = vld [vmem:[%s358 + $0x8] sm:$0xff]
        %369 = vrot.lane.b32.xlu0 %v339, 127
        %v370 = vpop.permute.xlu0 %369
        %371 = vrot.lane.b32.xlu0 %v340, 127
        %v372 = vpop.permute.xlu0 %371
        %373 = vrot.lane.b32.xlu0 %v341, 127
        %v374 = vpop.permute.xlu0 %373
        %375 = vrot.lane.b32.xlu0 %v342, 127
        %v376 = vpop.permute.xlu0 %375
        %377 = vrot.lane.b32.xlu0 %v343, 127
        %v378 = vpop.permute.xlu0 %377
        %379 = vrot.lane.b32.xlu0 %v344, 127
        %v380 = vpop.permute.xlu0 %379
        %381 = vrot.lane.b32.xlu0 %v345, 127
        %v382 = vpop.permute.xlu0 %381
        %383 = vrot.lane.b32.xlu0 %v346, 127
        %v384 = vpop.permute.xlu0 %383
        %v393 = vmul.f32 %v359, %v370
        %v394 = vmul.f32 %v360, %v372
        %v395 = vmul.f32 %v359, %v374
        %v396 = vmul.f32 %v360, %v376
        %v397 = vmul.f32 %v359, %v378
        %v398 = vmul.f32 %v360, %v380
        %v399 = vmul.f32 %v359, %v382
        %v400 = vmul.f32 %v360, %v384
        %v401 = vadd.f32 %v350, %v393
        %v402 = vadd.f32 %v351, %v394
        %v403 = vadd.f32 %v352, %v395
        %v404 = vadd.f32 %v353, %v396
        %v405 = vadd.f32 %v354, %v397
        %v406 = vadd.f32 %v355, %v398
        %v407 = vadd.f32 %v356, %v399
        %v408 = vadd.f32 %v357, %v400
        %s409 = scalar_lea.vmem %s224, 80
        %v410 = vld [vmem:[%s409] sm:$0xff]
        %v411 = vld [vmem:[%s409 + $0x8] sm:$0xff]
        %412 = vrot.lane.b32.xlu0 %v339, 126
        %v413 = vpop.permute.xlu0 %412
        %414 = vrot.lane.b32.xlu0 %v340, 126
        %v415 = vpop.permute.xlu0 %414
        %416 = vrot.lane.b32.xlu0 %v341, 126
        %v417 = vpop.permute.xlu0 %416
        %418 = vrot.lane.b32.xlu0 %v342, 126
        %v419 = vpop.permute.xlu0 %418
        %420 = vrot.lane.b32.xlu0 %v343, 126
        %v421 = vpop.permute.xlu0 %420
        %422 = vrot.lane.b32.xlu0 %v344, 126
        %v423 = vpop.permute.xlu0 %422
        %424 = vrot.lane.b32.xlu0 %v345, 126
        %v425 = vpop.permute.xlu0 %424
        %426 = vrot.lane.b32.xlu0 %v346, 126
        %v427 = vpop.permute.xlu0 %426
        %v436 = vmul.f32 %v410, %v413
        %v437 = vmul.f32 %v411, %v415
        %v438 = vmul.f32 %v410, %v417
        %v439 = vmul.f32 %v411, %v419
        %v440 = vmul.f32 %v410, %v421
        %v441 = vmul.f32 %v411, %v423
        %v442 = vmul.f32 %v410, %v425
        %v443 = vmul.f32 %v411, %v427
        %v444 = vadd.f32 %v401, %v436
        %v445 = vadd.f32 %v402, %v437
        %v446 = vadd.f32 %v403, %v438
        %v447 = vadd.f32 %v404, %v439
        %v448 = vadd.f32 %v405, %v440
        %v449 = vadd.f32 %v406, %v441
        %v450 = vadd.f32 %v407, %v442
        %v451 = vadd.f32 %v408, %v443
        %v452 = vadd.f32 %v331, %v444
        %v453 = vadd.f32 %v332, %v445
        %v454 = vadd.f32 %v333, %v446
        %v455 = vadd.f32 %v334, %v447
        %v456 = vadd.f32 %v335, %v448
        %v457 = vadd.f32 %v336, %v449
        %v458 = vadd.f32 %v337, %v450
        %v459 = vadd.f32 %v338, %v451
        %v460 = vld [vmem:[%s214 + $0x2] sm:$0xff]
        %v461 = vld [vmem:[%s214 + $0xa] sm:$0xff]
        %v462 = vld [vmem:[%s214 + $0x1a] sm:$0xff]
        %v463 = vld [vmem:[%s214 + $0x22] sm:$0xff]
        %v464 = vld [vmem:[%s214 + $0x32] sm:$0xff]
        %v465 = vld [vmem:[%s214 + $0x3a] sm:$0xff]
        %v466 = vld [vmem:[%s214 + $0x4a] sm:$0xff]
        %v467 = vld [vmem:[%s214 + $0x52] sm:$0xff]
        %s468 = scalar_lea.vmem %s224, 96
        %v469 = vld [vmem:[%s468] sm:$0xff]
        %v470 = vld [vmem:[%s468 + $0x8] sm:$0xff]
        %v471 = vmul.f32 %v469, %v460
        %v472 = vmul.f32 %v470, %v461
        %v473 = vmul.f32 %v469, %v462
        %v474 = vmul.f32 %v470, %v463
        %v475 = vmul.f32 %v469, %v464
        %v476 = vmul.f32 %v470, %v465
        %v477 = vmul.f32 %v469, %v466
        %v478 = vmul.f32 %v470, %v467
        %s479 = scalar_lea.vmem %s224, 112
        %v480 = vld [vmem:[%s479] sm:$0xff]
        %v481 = vld [vmem:[%s479 + $0x8] sm:$0xff]
        %490 = vrot.lane.b32.xlu0 %v460, 127
        %v491 = vpop.permute.xlu0 %490
        %492 = vrot.lane.b32.xlu0 %v461, 127
        %v493 = vpop.permute.xlu0 %492
        %494 = vrot.lane.b32.xlu0 %v462, 127
        %v495 = vpop.permute.xlu0 %494
        %496 = vrot.lane.b32.xlu0 %v463, 127
        %v497 = vpop.permute.xlu0 %496
        %498 = vrot.lane.b32.xlu0 %v464, 127
        %v499 = vpop.permute.xlu0 %498
        %500 = vrot.lane.b32.xlu0 %v465, 127
        %v501 = vpop.permute.xlu0 %500
        %502 = vrot.lane.b32.xlu0 %v466, 127
        %v503 = vpop.permute.xlu0 %502
        %504 = vrot.lane.b32.xlu0 %v467, 127
        %v505 = vpop.permute.xlu0 %504
        %v514 = vmul.f32 %v480, %v491
        %v515 = vmul.f32 %v481, %v493
        %v516 = vmul.f32 %v480, %v495
        %v517 = vmul.f32 %v481, %v497
        %v518 = vmul.f32 %v480, %v499
        %v519 = vmul.f32 %v481, %v501
        %v520 = vmul.f32 %v480, %v503
        %v521 = vmul.f32 %v481, %v505
        %v522 = vadd.f32 %v471, %v514
        %v523 = vadd.f32 %v472, %v515
        %v524 = vadd.f32 %v473, %v516
        %v525 = vadd.f32 %v474, %v517
        %v526 = vadd.f32 %v475, %v518
        %v527 = vadd.f32 %v476, %v519
        %v528 = vadd.f32 %v477, %v520
        %v529 = vadd.f32 %v478, %v521
        %s530 = scalar_lea.vmem %s224, 128
        %v531 = vld [vmem:[%s530] sm:$0xff]
        %v532 = vld [vmem:[%s530 + $0x8] sm:$0xff]
        %533 = vrot.lane.b32.xlu0 %v460, 126
        %v534 = vpop.permute.xlu0 %533
        %535 = vrot.lane.b32.xlu0 %v461, 126
        %v536 = vpop.permute.xlu0 %535
        %537 = vrot.lane.b32.xlu0 %v462, 126
        %v538 = vpop.permute.xlu0 %537
        %539 = vrot.lane.b32.xlu0 %v463, 126
        %v540 = vpop.permute.xlu0 %539
        %541 = vrot.lane.b32.xlu0 %v464, 126
        %v542 = vpop.permute.xlu0 %541
        %543 = vrot.lane.b32.xlu0 %v465, 126
        %v544 = vpop.permute.xlu0 %543
        %545 = vrot.lane.b32.xlu0 %v466, 126
        %v546 = vpop.permute.xlu0 %545
        %547 = vrot.lane.b32.xlu0 %v467, 126
        %v548 = vpop.permute.xlu0 %547
        %v557 = vmul.f32 %v531, %v534
        %v558 = vmul.f32 %v532, %v536
        %v559 = vmul.f32 %v531, %v538
        %v560 = vmul.f32 %v532, %v540
        %v561 = vmul.f32 %v531, %v542
        %v562 = vmul.f32 %v532, %v544
        %v563 = vmul.f32 %v531, %v546
        %v564 = vmul.f32 %v532, %v548
        %v565 = vadd.f32 %v522, %v557
        %v566 = vadd.f32 %v523, %v558
        %v567 = vadd.f32 %v524, %v559
        %v568 = vadd.f32 %v525, %v560
        %v569 = vadd.f32 %v526, %v561
        %v570 = vadd.f32 %v527, %v562
        %v571 = vadd.f32 %v528, %v563
        %v572 = vadd.f32 %v529, %v564
        %v573 = vadd.f32 %v452, %v565
        %v574 = vadd.f32 %v453, %v566
        %v575 = vadd.f32 %v454, %v567
        %v576 = vadd.f32 %v455, %v568
        %v577 = vadd.f32 %v456, %v569
        %v578 = vadd.f32 %v457, %v570
        %v579 = vadd.f32 %v458, %v571
        %v580 = vadd.f32 %v459, %v572
        %v581 = vld [vmem:[%s2] sm:$0x1]
        %v582 = vld [vmem:[%s2 + $0x1] sm:$0x1]
        %v583 = vld [vmem:[%s2 + $0x2] sm:$0x1]
        %v584 = vld [vmem:[%s2 + $0x3] sm:$0x1]
        %v589 = vlaneseq
        %v590 = vshrl.u32 %v589, 7
        %v591 = vsub.s32 0, %v590
        %v592 = vrot.slane %v581, %v591
        %v593 = vlaneseq
        %v594 = vshrl.u32 %v593, 7
        %v595 = vsub.s32 0, %v594
        %v596 = vrot.slane %v582, %v595
        %v597 = vlaneseq
        %v598 = vshrl.u32 %v597, 7
        %v599 = vsub.s32 0, %v598
        %v600 = vrot.slane %v583, %v599
        %v601 = vlaneseq
        %v602 = vshrl.u32 %v601, 7
        %v603 = vsub.s32 0, %v602
        %v604 = vrot.slane %v584, %v603
        %605 = vset.pattern.permute.xlu0 0
        %606 = vperm.xlu0 %605, %v592
        %v607 = vpop.permute.xlu0 %606
        %609 = vset.pattern.permute.xlu0 0
        %610 = vperm.xlu0 %609, %v596
        %v611 = vpop.permute.xlu0 %610
        %613 = vset.pattern.permute.xlu0 0
        %614 = vperm.xlu0 %613, %v600
        %v615 = vpop.permute.xlu0 %614
        %617 = vset.pattern.permute.xlu0 0
        %618 = vperm.xlu0 %617, %v604
        %v619 = vpop.permute.xlu0 %618
        %v621 = vadd.f32 %v573, %v607
        %v622 = vadd.f32 %v574, %v607
        %v623 = vadd.f32 %v575, %v611
        %v624 = vadd.f32 %v576, %v611
        %v625 = vadd.f32 %v577, %v615
        %v626 = vadd.f32 %v578, %v615
        %v627 = vadd.f32 %v579, %v619
        %v628 = vadd.f32 %v580, %v619
        %vm629 = vcmask 130048
        %630 = vst.msk [vmem:[%s208] sm:$0xff] %vm629, %v621
        %631 = vst.msk [vmem:[%s208 + $0x8] sm:$0xff] %vm629, %v622
        %632 = vst.msk [vmem:[%s208 + $0x10] sm:$0xff] %vm629, %v623
        %633 = vst.msk [vmem:[%s208 + $0x18] sm:$0xff] %vm629, %v624
        %634 = vst.msk [vmem:[%s208 + $0x20] sm:$0xff] %vm629, %v625
        %635 = vst.msk [vmem:[%s208 + $0x28] sm:$0xff] %vm629, %v626
        %636 = vst.msk [vmem:[%s208 + $0x30] sm:$0xff] %vm629, %v627
        %637 = vst.msk [vmem:[%s208 + $0x38] sm:$0xff] %vm629, %v628
        %s638 = sand.u32 %s116, 1
        %s639 = scalar_lea.sflag [#allocation3], %s638
        %s640 = sand.u32 %s116, 1
        %s641 = smul.addr %s640, 64
        %s642 = scalar_lea.vmem [#allocation2], %s641
        // Predicated region
        $region33: #{_weighted_filter_impl.1} parent=31 // pred_check
          %p643 = pneg %p126
        $region34: #{_weighted_filter_impl.1} parent=31 // pred_check_branch
          %645 = sbr.rel (%p643) target = $region36
        $region35: #{_weighted_filter_impl.1} parent=31 // pred_region
          %s646 = smul.u32 2, %s22
          %s648 = ssub.s32 1024, 1024
          %649 = vsyncadd %s639, %s648
          %s650 = smul.addr %s21, 8
          %s651 = sadd.s32 %s646, %s650
          %s652 = smul.addr %s651, 128
          %s653 = scalar_lea.hbm %s3, %s652
          %s654 = sshll.u32 %s642, 4
          %s655 = int_to_ptr.vmem [resolvable:$true] %s654
          %660 = dma.vmem_to_hbm [thread:$0]  %s655, 1024, %s653, %s639, 128, 128, 8
        $region36: #{_weighted_filter_impl.1} parent=31 // pred_fallthru
          _
      $region32: #{_weighted_filter_impl.1} parent=5 // pred_fallthru
        _
      %p661 = scmp.le.s32.totalorder 2, %s12
      // Predicated region
      $region37: #{_weighted_filter_impl.1} parent=5 // pred_check
        %p662 = pneg %p661
      $region38: #{_weighted_filter_impl.1} parent=5 // pred_check_branch
        %664 = sbr.rel (%p662) target = $region40
      $region39: #{_weighted_filter_impl.1} parent=5 // pred_region
        %s665 = ssub.s32 %s12, 2
        // Predicated region
        $region41: #{_weighted_filter_impl.1} parent=39 // pred_check
          %p666 = pneg %p132
        $region42: #{_weighted_filter_impl.1} parent=39 // pred_check_branch
          %668 = sbr.rel (%p666) target = $region44
        $region43: #{_weighted_filter_impl.1} parent=39 // pred_region
          %s669 = sand.u32 %s117, 1
          %s670 = scalar_lea.sflag [#allocation3], %s669
          %s671 = sand.u32 %s117, 1
          %s672 = smul.addr %s671, 64
          %s673 = scalar_lea.vmem [#allocation2], %s672
          %674 = dma.done %s670, 1024
        $region44: #{_weighted_filter_impl.1} parent=39 // pred_fallthru
          _
      $region40: #{_weighted_filter_impl.1} parent=5 // pred_fallthru
        _
    $region6: #{_weighted_filter_impl.1} parent=1 // loop_footer
      %s16 = sadd.s32 1, %s12
    $region7: #{_weighted_filter_impl.1} parent=1 // loop_footer_branch
      %11 = sbr.rel target = $region3
    $region8: #{_weighted_filter_impl.1} parent=1 // loop_exit
      _
    %675 = vsyncpa [#allocation3], 1
    %s676 = scalar_lea.sflag [#allocation3], 1
    %677 = vsyncpa %s676, 1

</llo_original>
